<compile_context>
chip_gen: v5e
topology: v5e:2x2
jax: 0.10.0
libtpu: 0.0.40
codegen_flags: <defaults>
</compile_context>

<pallas_src>
import numpy as np
import jax
import jax.numpy as jnp
from jax.experimental import pallas as pl
from jax.experimental.pallas import tpu as pltpu

EPS = 1e-5                 # nn.BatchNorm1d default eps
POOL_IN = 256              # lanes consumed per pool-matmul chunk
POOL_OUT = 128             # lanes produced per pool-matmul chunk
_INV_SQRT2 = 0.7071067811865476


def transition_kernel(x_ref, scale_ref, shift_ref, wbig_ref, bbig_ref, pool_ref, o_ref):
    # x_ref:     (TILE_N, C_in, TILE_L)   native dtype, NCL layout (L on lanes)
    # scale/shift: (1, C_in, 1)           folded BN affine
    # wbig_ref:  (TILE_N*C_out, TILE_N*C_in)  block-diagonal conv weight
    # bbig_ref:  (TILE_N*C_out, 1)
    # pool_ref:  (POOL_IN, POOL_OUT)      fixed 0.5-valued avg-pool chunk matrix
    # o_ref:     (TILE_N, C_out, TILE_L//2)
    f32 = jnp.float32
    tile_n, c_in, tile_l = x_ref.shape
    c_out = o_ref.shape[1]
    tile_hl = tile_l // 2

    # BatchNorm1d (eval, affine folded host-side) + exact erf GELU, f32 on the VPU.
    h = x_ref[...].astype(f32) * scale_ref[...] + shift_ref[...]
    h = 0.5 * h * (1.0 + jax.lax.erf(h * f32(_INV_SQRT2)))

    # Merge (TILE_N, C_in) onto sublanes -> many-row LHS for the matmuls.
    # Layout-free when C_in % 8 == 0 (wrapper guarantees TILE_N == 1 otherwise).
    hm = h.reshape(tile_n * c_in, tile_l)

    # AvgPool1d(2,2) BEFORE the 1x1 conv (exact commute), as a chunked matmul against a fixed
    # 256x128 constant -> MXU cost and VMEM scale linearly with TILE_L.
    n_chunks = tile_l // POOL_IN
    chunks = []
    for ci in range(n_chunks):                                # static unroll
        hc = hm[:, ci * POOL_IN:(ci + 1) * POOL_IN]           # 128-aligned lane slice
        chunks.append(jnp.dot(hc, pool_ref[...], preferred_element_type=f32))
    pooled = chunks[0] if n_chunks == 1 else jnp.concatenate(chunks, axis=-1)
    # pooled: (TILE_N*C_in, TILE_L//2)

    # Conv1d(kernel_size=1): single block-diagonal matmul covering all TILE_N batch rows.
    ym = jnp.dot(wbig_ref[...], pooled, preferred_element_type=f32) + bbig_ref[...]
    o_ref[...] = ym.reshape(tile_n, c_out, tile_hl).astype(o_ref.dtype)


def _choose_tiles(N, C_in, C_out, L_pad, itemsize):
    # Longest 256-aligned L tile that divides L_pad, preferring >=2 L-tiles (pipelining).
    cands = [t for t in (2048, 1024, 512, 256) if L_pad % t == 0]
    tile_l = cands[0]
    for t in cands:
        if L_pad // t >= 2:
            tile_l = t
            break
    # Bound a single channel-row slab for very wide channel counts (VMEM safety on v7x).
    while C_in * tile_l * itemsize > (4 << 20) and tile_l > 256:
        tile_l //= 2

    # Batch rows per step: fill ~1 MiB of input, keep merged rows <= 256, divide N.
    # Row-merge reshape must stay layout-free -> require C_in % 8 == 0 and C_out % 8 == 0.
    if (C_in % 8) or (C_out % 8):
        tile_n = 1
    else:
        per_row = C_in * tile_l * itemsize
        tile_n = max(1, min(N, max(1, 256 // C_in), (1 << 20) // max(per_row, 1)))
        while N % tile_n:
            tile_n -= 1
    # Keep >=2 total grid steps when possible (v7x has two TensorCores).
    if (N // tile_n) * (L_pad // tile_l) < 2 and tile_n > 1:
        tile_n = max(1, tile_n // 2)
        while N % tile_n:
            tile_n -= 1
    return tile_n, tile_l


@jax.jit
def transition_block(x_ncl, gamma, beta, run_mean, run_var, conv_w, conv_b):
    """x_ncl: (N, C_in, L) -> (N, C_out, L//2).  PyTorch eval-mode semantics."""
    N, C_in, L = x_ncl.shape
    C_out = conv_w.shape[0]
    f32 = jnp.float32

    # AvgPool1d(2,2) drops a trailing odd element; pad L up to a multiple of 256 so tiles and
    # the TILE_L//2 output lane width stay 128-aligned.  Padding is trimmed exactly afterwards.
    L_eff = (L // 2) * 2
    L_out = L // 2
    L_pad = ((L_eff + 255) // 256) * 256
    x = x_ncl[:, :, :L_eff]
    if L_pad != L_eff:
        x = jnp.pad(x, ((0, 0), (0, 0), (0, L_pad - L_eff)))

    tile_n, tile_l = _choose_tiles(N, C_in, C_out, L_pad, x.dtype.itemsize)
    tile_hl = tile_l // 2
    grid = (N // tile_n, L_pad // tile_l)

    # Fold BatchNorm affine (inside this jit): y = x*scale + shift.
    scale = gamma.astype(f32) * jax.lax.rsqrt(run_var.astype(f32) + EPS)
    shift = beta.astype(f32) - run_mean.astype(f32) * scale
    scale = scale.reshape(1, C_in, 1)
    shift = shift.reshape(1, C_in, 1)

    # Block-diagonal conv weight / tiled bias covering the TILE_N merged batch rows.
    w = conv_w[:, :, 0].astype(f32)                                  # (C_out, C_in)
    w_big = jnp.kron(jnp.eye(tile_n, dtype=f32), w)                  # (TN*C_out, TN*C_in)
    b_big = jnp.tile(conv_b.astype(f32).reshape(C_out, 1), (tile_n, 1))

    # Fixed 256x128 avg-pool chunk matrix (compile-time numpy constant, VMEM-resident).
    pool_np = np.zeros((POOL_IN, POOL_OUT), dtype=np.float32)
    pool_np[2 * np.arange(POOL_OUT), np.arange(POOL_OUT)] = 0.5
    pool_np[2 * np.arange(POOL_OUT) + 1, np.arange(POOL_OUT)] = 0.5
    pool_mat = jnp.asarray(pool_np)

    cost = pl.CostEstimate(
        flops=int(10 * N * C_in * L_pad                      # BN + GELU polynomial
                  + 2 * N * C_in * L_pad * POOL_OUT          # chunked pool matmul
                  + 2 * N * C_out * C_in * (L_pad // 2)),    # 1x1 conv
        transcendentals=int(N * C_in * L_pad),
        bytes_accessed=int(x.size * x.dtype.itemsize + N * C_out * (L_pad // 2) * 4),
    )

    grid_spec = pl.GridSpec(
        grid=grid,
        in_specs=[
            pl.BlockSpec((tile_n, C_in, tile_l), lambda n, l: (n, 0, l)),    # x (native dtype)
            pl.BlockSpec((1, C_in, 1), lambda n, l: (0, 0, 0)),              # BN scale
            pl.BlockSpec((1, C_in, 1), lambda n, l: (0, 0, 0)),              # BN shift
            pl.BlockSpec(w_big.shape, lambda n, l: (0, 0)),                  # conv weight (blockdiag)
            pl.BlockSpec(b_big.shape, lambda n, l: (0, 0)),                  # conv bias
            pl.BlockSpec((POOL_IN, POOL_OUT), lambda n, l: (0, 0)),          # pool chunk matrix
        ],
        out_specs=pl.BlockSpec((tile_n, C_out, tile_hl), lambda n, l: (n, 0, l)),
    )

    out = pl.pallas_call(
        transition_kernel,
        out_shape=jax.ShapeDtypeStruct((N, C_out, L_pad // 2), f32),
        grid_spec=grid_spec,
        compiler_params=pltpu.CompilerParams(
            dimension_semantics=("parallel", "parallel"),
            vmem_limit_bytes=32 * 1024 * 1024,    # fits v5e/v6e/v7x scoped VMEM
        ),
        cost_estimate=cost,
    )(x, scale, shift, w_big, b_big, pool_mat)

    return out[:, :, :L_out]


def reference(x_ncl, gamma, beta, run_mean, run_var, conv_w, conv_b):
    # pure-JAX reference of the same forward pass (sanity check)
    xn = (x_ncl - run_mean[None, :, None]) * jax.lax.rsqrt(run_var[None, :, None] + EPS)
    xn = xn * gamma[None, :, None] + beta[None, :, None]
    h = 0.5 * xn * (1.0 + jax.lax.erf(xn / jnp.sqrt(2.0)))
    y = jnp.einsum("ncl,oc->nol", h, conv_w[:, :, 0]) + conv_b[None, :, None]
    N, O, L = y.shape
    return y[:, :, : (L // 2) * 2].reshape(N, O, L // 2, 2).mean(axis=-1)


if __name__ == "__main__":
    key = jax.random.PRNGKey(0)
    k_x, k_g, k_b, k_m, k_v, k_w, k_cb = jax.random.split(key, 7)

    # Small shapes consistent with TransitionBlock; L=1024 -> TILE_L=512, TILE_N=2, grid=(1, 2).
    N, C_in, C_out, L = 2, 8, 16, 1024
    x = jax.random.normal(k_x, (N, C_in, L), dtype=jnp.float32)

    # deterministic synthetic parameters (shapes from TransitionBlock.__init__)
    gamma = 1.0 + 0.1 * jax.random.normal(k_g, (C_in,), dtype=jnp.float32)
    beta = 0.1 * jax.random.normal(k_b, (C_in,), dtype=jnp.float32)
    run_mean = 0.1 * jax.random.normal(k_m, (C_in,), dtype=jnp.float32)
    run_var = jax.random.uniform(k_v, (C_in,), minval=0.5, maxval=1.5, dtype=jnp.float32)
    conv_w = 0.1 * jax.random.normal(k_w, (C_out, C_in, 1), dtype=jnp.float32)
    conv_b = 0.1 * jax.random.normal(k_cb, (C_out,), dtype=jnp.float32)

    out = transition_block(x, gamma, beta, run_mean, run_var, conv_w, conv_b)
    out = jax.block_until_ready(out)

    ref = reference(x, gamma, beta, run_mean, run_var, conv_w, conv_b)
    assert out.shape == (N, C_out, L // 2), out.shape
    max_err = float(jnp.abs(out - ref).max())
    assert max_err < 1e-3, max_err

    print("KERNEL_OK")
</pallas_src>

<mosaic_0001>
module attributes {stable_mosaic.version = 11 : i64} {
  func.func @transition_kernel(%arg0: i32, %arg1: i32, %arg2: memref<2x8x512xf32, #tpu.memory_space<vmem>>, %arg3: memref<1x8x1xf32, #tpu.memory_space<vmem>>, %arg4: memref<1x8x1xf32, #tpu.memory_space<vmem>>, %arg5: memref<32x16xf32, #tpu.memory_space<vmem>>, %arg6: memref<32x1xf32, #tpu.memory_space<vmem>>, %arg7: memref<256x128xf32, #tpu.memory_space<vmem>>, %arg8: memref<2x16x256xf32, #tpu.memory_space<vmem>>) attributes {dimension_semantics = [#tpu.dimension_semantics<parallel>, #tpu.dimension_semantics<parallel>], iteration_bounds = array<i64: 1, 2>, scalar_prefetch = 0 : i64, scratch_operands = 0 : i64, tpu.core_type = #tpu.core_type<tc>, window_params = [{transform_indices = @transform_0, window_bounds = array<i64: 2, 8, 512>}, {pipeline_mode = #tpu.pipeline_mode<synchronous>, transform_indices = @transform_1, window_bounds = array<i64: 1, 8, 1>}, {pipeline_mode = #tpu.pipeline_mode<synchronous>, transform_indices = @transform_2, window_bounds = array<i64: 1, 8, 1>}, {pipeline_mode = #tpu.pipeline_mode<synchronous>, transform_indices = @transform_3, window_bounds = array<i64: 32, 16>}, {pipeline_mode = #tpu.pipeline_mode<synchronous>, transform_indices = @transform_4, window_bounds = array<i64: 32, 1>}, {pipeline_mode = #tpu.pipeline_mode<synchronous>, transform_indices = @transform_5, window_bounds = array<i64: 256, 128>}, {transform_indices = @transform_6, window_bounds = array<i64: 2, 16, 256>}]} {
    %c0 = arith.constant 0 : index
    %c0_0 = arith.constant 0 : index
    %c0_1 = arith.constant 0 : index
    %0 = vector.load %arg2[%c0, %c0_0, %c0_1] : memref<2x8x512xf32, #tpu.memory_space<vmem>>, vector<2x8x512xf32>
    %c0_2 = arith.constant 0 : index
    %c0_3 = arith.constant 0 : index
    %c0_4 = arith.constant 0 : index
    %1 = vector.load %arg3[%c0_2, %c0_3, %c0_4] : memref<1x8x1xf32, #tpu.memory_space<vmem>>, vector<1x8x1xf32>
    %2 = vector.broadcast %1 : vector<1x8x1xf32> to vector<2x8x512xf32>
    %3 = arith.mulf %0, %2 : vector<2x8x512xf32>
    %c0_5 = arith.constant 0 : index
    %c0_6 = arith.constant 0 : index
    %c0_7 = arith.constant 0 : index
    %4 = vector.load %arg4[%c0_5, %c0_6, %c0_7] : memref<1x8x1xf32, #tpu.memory_space<vmem>>, vector<1x8x1xf32>
    %5 = vector.broadcast %4 : vector<1x8x1xf32> to vector<2x8x512xf32>
    %6 = arith.addf %3, %5 : vector<2x8x512xf32>
    %cst = arith.constant 5.000000e-01 : f32
    %7 = vector.broadcast %cst : f32 to vector<2x8x512xf32>
    %8 = arith.mulf %7, %6 : vector<2x8x512xf32>
    %cst_8 = arith.constant 0.707106769 : f32
    %9 = vector.broadcast %cst_8 : f32 to vector<2x8x512xf32>
    %10 = arith.mulf %6, %9 : vector<2x8x512xf32>
    %11 = math.erf %10 : vector<2x8x512xf32>
    %cst_9 = arith.constant 1.000000e+00 : f32
    %12 = vector.broadcast %cst_9 : f32 to vector<2x8x512xf32>
    %13 = arith.addf %12, %11 : vector<2x8x512xf32>
    %14 = arith.mulf %8, %13 : vector<2x8x512xf32>
    %15 = vector.shape_cast %14 : vector<2x8x512xf32> to vector<16x512xf32>
    %16 = vector.extract_strided_slice %15 {offsets = [0, 0], sizes = [16, 256], strides = [1, 1]} : vector<16x512xf32> to vector<16x256xf32>
    %c0_10 = arith.constant 0 : index
    %c0_11 = arith.constant 0 : index
    %17 = vector.load %arg7[%c0_10, %c0_11] : memref<256x128xf32, #tpu.memory_space<vmem>>, vector<256x128xf32>
    %cst_12 = arith.constant dense<0.000000e+00> : vector<16x128xf32>
    %18 = tpu.matmul %16, %17, %cst_12 {dimension_numbers = #tpu.dot_dimension_numbers<[1], [0], [0], [1], [0, 0, 1, 1], [], []>} : vector<16x256xf32>, vector<256x128xf32>, vector<16x128xf32> -> vector<16x128xf32>
    %19 = vector.extract_strided_slice %15 {offsets = [0, 256], sizes = [16, 256], strides = [1, 1]} : vector<16x512xf32> to vector<16x256xf32>
    %c0_13 = arith.constant 0 : index
    %c0_14 = arith.constant 0 : index
    %20 = vector.load %arg7[%c0_13, %c0_14] : memref<256x128xf32, #tpu.memory_space<vmem>>, vector<256x128xf32>
    %cst_15 = arith.constant dense<0.000000e+00> : vector<16x128xf32>
    %21 = tpu.matmul %19, %20, %cst_15 {dimension_numbers = #tpu.dot_dimension_numbers<[1], [0], [0], [1], [0, 0, 1, 1], [], []>} : vector<16x256xf32>, vector<256x128xf32>, vector<16x128xf32> -> vector<16x128xf32>
    %22 = tpu.concatenate %18, %21 in 1 : vector<16x128xf32>, vector<16x128xf32> -> vector<16x256xf32>
    %c0_16 = arith.constant 0 : index
    %c0_17 = arith.constant 0 : index
    %23 = vector.load %arg5[%c0_16, %c0_17] : memref<32x16xf32, #tpu.memory_space<vmem>>, vector<32x16xf32>
    %cst_18 = arith.constant dense<0.000000e+00> : vector<32x256xf32>
    %24 = tpu.matmul %23, %22, %cst_18 {dimension_numbers = #tpu.dot_dimension_numbers<[1], [0], [0], [1], [0, 0, 1, 1], [], []>} : vector<32x16xf32>, vector<16x256xf32>, vector<32x256xf32> -> vector<32x256xf32>
    %c0_19 = arith.constant 0 : index
    %c0_20 = arith.constant 0 : index
    %25 = vector.load %arg6[%c0_19, %c0_20] : memref<32x1xf32, #tpu.memory_space<vmem>>, vector<32x1xf32>
    %26 = vector.broadcast %25 : vector<32x1xf32> to vector<32x256xf32>
    %27 = arith.addf %24, %26 : vector<32x256xf32>
    %28 = vector.shape_cast %27 : vector<32x256xf32> to vector<2x16x256xf32>
    %c0_21 = arith.constant 0 : index
    %c0_22 = arith.constant 0 : index
    %c0_23 = arith.constant 0 : index
    %29 = vector.load %arg8[%c0_21, %c0_22, %c0_23] : memref<2x16x256xf32, #tpu.memory_space<vmem>>, vector<2x16x256xf32>
    tpu.vector_store %arg8[%c0_21, %c0_22, %c0_23], %28 {strides = array<i32>} : memref<2x16x256xf32, #tpu.memory_space<vmem>>, vector<2x16x256xf32>,
    return
  }
  func.func @transform_0(%arg0: i32, %arg1: i32) -> (i32, i32, i32) {
    %c0_i32 = arith.constant 0 : i32
    %c0_i32_0 = arith.constant 0 : i32
    return %arg0, %c0_i32, %arg1 : i32, i32, i32
  }
  func.func @transform_1(%arg0: i32, %arg1: i32) -> (i32, i32, i32) {
    %c0_i32 = arith.constant 0 : i32
    %c0_i32_0 = arith.constant 0 : i32
    %c0_i32_1 = arith.constant 0 : i32
    %c0_i32_2 = arith.constant 0 : i32
    return %c0_i32, %c0_i32_0, %c0_i32_1 : i32, i32, i32
  }
  func.func @transform_2(%arg0: i32, %arg1: i32) -> (i32, i32, i32) {
    %c0_i32 = arith.constant 0 : i32
    %c0_i32_0 = arith.constant 0 : i32
    %c0_i32_1 = arith.constant 0 : i32
    %c0_i32_2 = arith.constant 0 : i32
    return %c0_i32, %c0_i32_0, %c0_i32_1 : i32, i32, i32
  }
  func.func @transform_3(%arg0: i32, %arg1: i32) -> (i32, i32) {
    %c0_i32 = arith.constant 0 : i32
    %c0_i32_0 = arith.constant 0 : i32
    %c0_i32_1 = arith.constant 0 : i32
    return %c0_i32, %c0_i32_0 : i32, i32
  }
  func.func @transform_4(%arg0: i32, %arg1: i32) -> (i32, i32) {
    %c0_i32 = arith.constant 0 : i32
    %c0_i32_0 = arith.constant 0 : i32
    %c0_i32_1 = arith.constant 0 : i32
    return %c0_i32, %c0_i32_0 : i32, i32
  }
  func.func @transform_5(%arg0: i32, %arg1: i32) -> (i32, i32) {
    %c0_i32 = arith.constant 0 : i32
    %c0_i32_0 = arith.constant 0 : i32
    %c0_i32_1 = arith.constant 0 : i32
    return %c0_i32, %c0_i32_0 : i32, i32
  }
  func.func @transform_6(%arg0: i32, %arg1: i32) -> (i32, i32, i32) {
    %c0_i32 = arith.constant 0 : i32
    %c0_i32_0 = arith.constant 0 : i32
    return %arg0, %c0_i32, %arg1 : i32, i32, i32
  }
}

</mosaic_0001>

<llo_original>
// kernel: transition_block.1
$region0: #{transition_block.1}
  #allocation0 [shape = 'u32[]', space=smem, size = 0x4, offset = 0x4, fixed_abs, tag = 'smem constant byte address 0x4 - core index']
  #allocation1 [shape = 'u32[72,128]{1,0:T(1,128)}', space=vmem, size = 0x9000, scoped, tag = 'internal scratch']
  %s0 = inlined_call_operand.vmem [shape: f32[2,8,1024], index: 0, kind: input, shape index: {}]
  %s1 = inlined_call_operand.vmem [shape: f32[1,8,1], index: 1, kind: input, shape index: {}]
  %s2 = inlined_call_operand.vmem [shape: f32[1,8,1], index: 2, kind: input, shape index: {}]
  %s3 = inlined_call_operand.vmem [shape: f32[32,16], index: 3, kind: input, shape index: {}]
  %s4 = inlined_call_operand.vmem [shape: f32[32,1], index: 4, kind: input, shape index: {}]
  %s5 = inlined_call_operand.hbm [shape: f32[256,128], index: 5, kind: input, shape index: {}]
  %s6 = inlined_call_operand.hbm [shape: f32[2,16,512], index: 6, kind: output, shape index: {}]
  %s7 = sld [smem:[#allocation0]]
  $region84: #{transition_block.1} parent=0
    _
  %s9 = ssub.s32 1, %s7
  %s10 = scalar_select 0, %s9, %s7
  $region1: #{transition_block.1} parent=0
    #allocation2 [shape = 'u8[65536]{0}', space=vmem, size = 0x10000, scoped, tag = 'input window, operand 0']
    #allocation3 [shape = 'u8[131072]{0}', space=vmem, size = 0x20000, scoped, tag = 'input window, operand 5, single buffered']
    #allocation4 [shape = 's32[2]{0}', space=sflag, size = 0x8, scoped, tag = 'scoped memory for transition_block.1']
    #allocation5 [shape = 's32[2]{0}', space=sflag, size = 0x8, scoped, tag = 'scoped memory for transition_block.1']
    #allocation6 [shape = 'u8[65536]{0}', space=vmem, size = 0x10000, scoped, tag = 'output window, operand 0']
    %11 = vsyncpa [#allocation4], 0
    %12 = vsyncpa [#allocation5], 0
    %s13 = scalar_lea.sflag [#allocation5], 1
    %14 = vsyncpa %s13, 0
    loop: start=0, step=1, limit=4
    $region2: #{transition_block.1} parent=1 // loop_pre_header
      _
    $region3: #{transition_block.1} parent=1 // loop_header
      %s16 = sphi 0, %s20
      %p17 = scmp.ge.s32.totalorder %s16, 4
      %s23 = sphi 0, %s35
      %s24 = sphi 0, %s31
      %s25 = sphi 0, %s23
      %s26 = sphi 0, %s24
      %s27 = sphi 0, %s25
      %s28 = sphi 0, %s26
      %s40 = sphi 0, %s42
      %s43 = sphi 0, %s40
      %s44 = sphi 0, %s43
      %s60 = sphi 0, %s44
      %s64 = sphi 0, %s64
      %s66 = sphi 0, %s64
      %s67 = sphi 0, %s66
      %s81 = sphi 0, %s67
      %s85 = sphi 0, %s85
      %s87 = sphi 0, %s85
      %s88 = sphi 0, %s87
      %s102 = sphi 0, %s88
      %s106 = sphi 0, %s106
      %s108 = sphi 0, %s106
      %s109 = sphi 0, %s108
      %s123 = sphi 0, %s109
      %s127 = sphi 0, %s127
      %s129 = sphi 0, %s127
      %s130 = sphi 0, %s129
      %s144 = sphi 0, %s130
      %s148 = sphi 0, %s148
      %s150 = sphi 0, %s148
      %s151 = sphi 0, %s150
      %s165 = sphi 0, %s151
      %s173 = sphi 0, %s175
      %s176 = sphi 0, %s173
      %s177 = sphi 0, %s176
      %s193 = sphi 0, %s177
    $region4: #{transition_block.1} parent=1 // loop_header_branch
      %19 = sbr.rel (%p17) target = $region8
    $region5: #{transition_block.1} parent=1 // loop_body
      %s21 = ssub.s32 %s16, 1
      %s22 = ssub.s32 %s16, 2
      %s29 = sadd.s32 1, %s24
      %p30 = scmp.ge.s32.totalorder %s29, 2
      %s31 = scalar_select %p30, 0, %s29
      %s32 = sadd.s32 1, %s23
      %s33 = scalar_select %p30, %s32, %s23
      %p34 = scmp.ge.s32.totalorder %s33, 1
      %s35 = scalar_select %p34, 0, %s33
      %s36 = ssub.s32 %s23, %s35
      %s37 = ssub.s32 %s24, %s31
      %s38 = sor.u32 %s36, %s37
      %p39 = scmp.eq.s32.totalorder %s38, 0
      %s41 = sadd.s32 %s40, 1
      %s42 = scalar_select %p39, %s40, %s41
      %p45 = pneg %p39
      %p46 = scmp.eq.s32.totalorder %s16, 1
      %p47 = por %p45, %p46
      %p48 = scmp.ne.s32.totalorder %s40, %s43
      %p49 = scmp.eq.s32.totalorder %s16, 0
      %p50 = por %p48, %p49
      %p51 = scmp.ne.s32.totalorder %s40, %s43
      %p52 = scmp.eq.s32.totalorder %s21, 1
      %p53 = por %p51, %p52
      %p54 = scmp.ne.s32.totalorder %s43, %s44
      %p55 = scmp.eq.s32.totalorder %s21, 0
      %p56 = por %p54, %p55
      %p57 = scmp.ne.s32.totalorder %s43, %s44
      %p58 = scmp.eq.s32.totalorder %s22, 1
      %p59 = por %p57, %p58
      %p61 = scmp.ne.s32.totalorder %s44, %s60
      %p62 = scmp.eq.s32.totalorder %s22, 0
      %p63 = por %p61, %p62
      %s65 = sadd.s32 %s64, 1
      %p68 = scmp.eq.s32.totalorder %s16, 1
      %p69 = scmp.ne.s32.totalorder %s64, %s66
      %p70 = scmp.eq.s32.totalorder %s16, 0
      %p71 = por %p69, %p70
      %p72 = scmp.ne.s32.totalorder %s64, %s66
      %p73 = scmp.eq.s32.totalorder %s21, 1
      %p74 = por %p72, %p73
      %p75 = scmp.ne.s32.totalorder %s66, %s67
      %p76 = scmp.eq.s32.totalorder %s21, 0
      %p77 = por %p75, %p76
      %p78 = scmp.ne.s32.totalorder %s66, %s67
      %p79 = scmp.eq.s32.totalorder %s22, 1
      %p80 = por %p78, %p79
      %p82 = scmp.ne.s32.totalorder %s67, %s81
      %p83 = scmp.eq.s32.totalorder %s22, 0
      %p84 = por %p82, %p83
      %s86 = sadd.s32 %s85, 1
      %p89 = scmp.eq.s32.totalorder %s16, 1
      %p90 = scmp.ne.s32.totalorder %s85, %s87
      %p91 = scmp.eq.s32.totalorder %s16, 0
      %p92 = por %p90, %p91
      %p93 = scmp.ne.s32.totalorder %s85, %s87
      %p94 = scmp.eq.s32.totalorder %s21, 1
      %p95 = por %p93, %p94
      %p96 = scmp.ne.s32.totalorder %s87, %s88
      %p97 = scmp.eq.s32.totalorder %s21, 0
      %p98 = por %p96, %p97
      %p99 = scmp.ne.s32.totalorder %s87, %s88
      %p100 = scmp.eq.s32.totalorder %s22, 1
      %p101 = por %p99, %p100
      %p103 = scmp.ne.s32.totalorder %s88, %s102
      %p104 = scmp.eq.s32.totalorder %s22, 0
      %p105 = por %p103, %p104
      %s107 = sadd.s32 %s106, 1
      %p110 = scmp.eq.s32.totalorder %s16, 1
      %p111 = scmp.ne.s32.totalorder %s106, %s108
      %p112 = scmp.eq.s32.totalorder %s16, 0
      %p113 = por %p111, %p112
      %p114 = scmp.ne.s32.totalorder %s106, %s108
      %p115 = scmp.eq.s32.totalorder %s21, 1
      %p116 = por %p114, %p115
      %p117 = scmp.ne.s32.totalorder %s108, %s109
      %p118 = scmp.eq.s32.totalorder %s21, 0
      %p119 = por %p117, %p118
      %p120 = scmp.ne.s32.totalorder %s108, %s109
      %p121 = scmp.eq.s32.totalorder %s22, 1
      %p122 = por %p120, %p121
      %p124 = scmp.ne.s32.totalorder %s109, %s123
      %p125 = scmp.eq.s32.totalorder %s22, 0
      %p126 = por %p124, %p125
      %s128 = sadd.s32 %s127, 1
      %p131 = scmp.eq.s32.totalorder %s16, 1
      %p132 = scmp.ne.s32.totalorder %s127, %s129
      %p133 = scmp.eq.s32.totalorder %s16, 0
      %p134 = por %p132, %p133
      %p135 = scmp.ne.s32.totalorder %s127, %s129
      %p136 = scmp.eq.s32.totalorder %s21, 1
      %p137 = por %p135, %p136
      %p138 = scmp.ne.s32.totalorder %s129, %s130
      %p139 = scmp.eq.s32.totalorder %s21, 0
      %p140 = por %p138, %p139
      %p141 = scmp.ne.s32.totalorder %s129, %s130
      %p142 = scmp.eq.s32.totalorder %s22, 1
      %p143 = por %p141, %p142
      %p145 = scmp.ne.s32.totalorder %s130, %s144
      %p146 = scmp.eq.s32.totalorder %s22, 0
      %p147 = por %p145, %p146
      %s149 = sadd.s32 %s148, 1
      %p152 = scmp.eq.s32.totalorder %s16, 1
      %p153 = scmp.ne.s32.totalorder %s148, %s150
      %p154 = scmp.eq.s32.totalorder %s16, 0
      %p155 = por %p153, %p154
      %p156 = scmp.ne.s32.totalorder %s148, %s150
      %p157 = scmp.eq.s32.totalorder %s21, 1
      %p158 = por %p156, %p157
      %p159 = scmp.ne.s32.totalorder %s150, %s151
      %p160 = scmp.eq.s32.totalorder %s21, 0
      %p161 = por %p159, %p160
      %p162 = scmp.ne.s32.totalorder %s150, %s151
      %p163 = scmp.eq.s32.totalorder %s22, 1
      %p164 = por %p162, %p163
      %p166 = scmp.ne.s32.totalorder %s151, %s165
      %p167 = scmp.eq.s32.totalorder %s22, 0
      %p168 = por %p166, %p167
      %s169 = ssub.s32 %s23, %s35
      %s170 = ssub.s32 %s24, %s31
      %s171 = sor.u32 %s169, %s170
      %p172 = scmp.eq.s32.totalorder %s171, 0
      %s174 = sadd.s32 %s173, 1
      %s175 = scalar_select %p172, %s173, %s174
      %p178 = pneg %p172
      %p179 = scmp.eq.s32.totalorder %s16, 1
      %p180 = por %p178, %p179
      %p181 = scmp.ne.s32.totalorder %s173, %s176
      %p182 = scmp.eq.s32.totalorder %s16, 0
      %p183 = por %p181, %p182
      %p184 = scmp.ne.s32.totalorder %s173, %s176
      %p185 = scmp.eq.s32.totalorder %s21, 1
      %p186 = por %p184, %p185
      %p187 = scmp.ne.s32.totalorder %s176, %s177
      %p188 = scmp.eq.s32.totalorder %s21, 0
      %p189 = por %p187, %p188
      %p190 = scmp.ne.s32.totalorder %s176, %s177
      %p191 = scmp.eq.s32.totalorder %s22, 1
      %p192 = por %p190, %p191
      %p194 = scmp.ne.s32.totalorder %s177, %s193
      %p195 = scmp.eq.s32.totalorder %s22, 0
      %p196 = por %p194, %p195
      %p197 = scmp.le.s32.totalorder 1, %s16
      %p198 = scmp.lt.s32.totalorder %s16, 3
      %p199 = pnand %p197, %p198
      %p200 = pneg %p199
      // Predicated region
      $region9: #{transition_block.1} parent=5 // pred_check
        _
      $region10: #{transition_block.1} parent=5 // pred_check_branch
        %202 = sbr.rel (%p199) target = $region12
      $region11: #{transition_block.1} parent=5 // pred_region
        %s203 = ssub.s32 %s16, 1
        // Predicated region
        $region13: #{transition_block.1} parent=11 // pred_check
          %p204 = pneg %p77
        $region14: #{transition_block.1} parent=11 // pred_check_branch
          %206 = sbr.rel (%p204) target = $region16
        $region15: #{transition_block.1} parent=11 // pred_region
          _
        $region16: #{transition_block.1} parent=11 // pred_fallthru
          _
        // Predicated region
        $region17: #{transition_block.1} parent=11 // pred_check
          %p207 = pneg %p98
        $region18: #{transition_block.1} parent=11 // pred_check_branch
          %209 = sbr.rel (%p207) target = $region20
        $region19: #{transition_block.1} parent=11 // pred_region
          _
        $region20: #{transition_block.1} parent=11 // pred_fallthru
          _
        // Predicated region
        $region21: #{transition_block.1} parent=11 // pred_check
          %p210 = pneg %p119
        $region22: #{transition_block.1} parent=11 // pred_check_branch
          %212 = sbr.rel (%p210) target = $region24
        $region23: #{transition_block.1} parent=11 // pred_region
          _
        $region24: #{transition_block.1} parent=11 // pred_fallthru
          _
        // Predicated region
        $region25: #{transition_block.1} parent=11 // pred_check
          %p213 = pneg %p140
        $region26: #{transition_block.1} parent=11 // pred_check_branch
          %215 = sbr.rel (%p213) target = $region28
        $region27: #{transition_block.1} parent=11 // pred_region
          _
        $region28: #{transition_block.1} parent=11 // pred_fallthru
          _
        // Predicated region
        $region29: #{transition_block.1} parent=11 // pred_check
          %p216 = pneg %p161
        $region30: #{transition_block.1} parent=11 // pred_check_branch
          %218 = sbr.rel (%p216) target = $region32
        $region31: #{transition_block.1} parent=11 // pred_region
          %220 = vsyncadd [#allocation4], 0
          %s221 = sshll.u32 %s5, 4
          %s222 = int_to_ptr.hbm [resolvable:$true] %s221
          %s223 = sshll.u32 [#allocation3], 4
          %s224 = int_to_ptr.vmem [resolvable:$true] %s223
          %229 = dma.hbm_to_vmem [thread:$0]  %s222, 4096, %s224, [#allocation4], 128, 128, 8
        $region32: #{transition_block.1} parent=11 // pred_fallthru
          _
      $region12: #{transition_block.1} parent=5 // pred_fallthru
        _
      %p230 = scmp.lt.s32.totalorder %s16, 2
      // Predicated region
      $region33: #{transition_block.1} parent=5 // pred_check
        %p231 = pneg %p230
      $region34: #{transition_block.1} parent=5 // pred_check_branch
        %233 = sbr.rel (%p231) target = $region36
      $region35: #{transition_block.1} parent=5 // pred_region
        // Predicated region
        $region37: #{transition_block.1} parent=35 // pred_check
          %p234 = pneg %p50
        $region38: #{transition_block.1} parent=35 // pred_check_branch
          %236 = sbr.rel (%p234) target = $region40
        $region39: #{transition_block.1} parent=35 // pred_region
          %s237 = sand.u32 %s40, 1
          %s238 = sand.u32 %s40, 1
          %s239 = smul.addr %s238, 64
          %s240 = scalar_lea.vmem [#allocation2], %s239
          %s241 = smul.u32 2, %s23
          %s242 = smul.u32 4, %s24
          %s243 = smul.addr %s241, 8
          %s244 = sadd.s32 %s242, %s243
          %s245 = smul.addr %s244, 8
          %s246 = scalar_lea.vmem %s0, %s245
          // Predicated region
          $region41: #{transition_block.1} parent=39 // pred_check
            _
          $region42: #{transition_block.1} parent=39 // pred_check_branch
            %248 = sbr.rel (0) target = $region44
          $region43: #{transition_block.1} parent=39 // pred_region
            // Predicated region
            $region45: #{transition_block.1} parent=43 // pred_check
              _
            $region46: #{transition_block.1} parent=43 // pred_check_branch
              %250 = sbr.rel (0) target = $region48
            $region47: #{transition_block.1} parent=43 // pred_region
              loop: start=0, step=1, limit=1
              $region49: #{transition_block.1} parent=47 // loop_pre_header
                _
              $region50: #{transition_block.1} parent=47 // loop_header
                %s252 = sphi 0, %s256
                %p253 = scmp.ge.s32.totalorder %s252, 1
                %s257 = sphi %s246, %s246
                %s258 = sphi %s240, %s240
              $region51: #{transition_block.1} parent=47 // loop_header_branch
                %255 = sbr.rel (%p253) target = $region55
              $region52: #{transition_block.1} parent=47 // loop_body
                %v259 = vld [vmem:[%s257] sm:$0xff]
                %260 = vst [vmem:[%s258] sm:$0xff] %v259
                %v261 = vld [vmem:[%s257 + $0x8] sm:$0xff]
                %262 = vst [vmem:[%s258 + $0x8] sm:$0xff] %v261
                %v263 = vld [vmem:[%s257 + $0x10] sm:$0xff]
                %264 = vst [vmem:[%s258 + $0x10] sm:$0xff] %v263
                %v265 = vld [vmem:[%s257 + $0x18] sm:$0xff]
                %266 = vst [vmem:[%s258 + $0x18] sm:$0xff] %v265
                %v267 = vld [vmem:[%s257 + $0x40] sm:$0xff]
                %268 = vst [vmem:[%s258 + $0x20] sm:$0xff] %v267
                %v269 = vld [vmem:[%s257 + $0x48] sm:$0xff]
                %270 = vst [vmem:[%s258 + $0x28] sm:$0xff] %v269
                %v271 = vld [vmem:[%s257 + $0x50] sm:$0xff]
                %272 = vst [vmem:[%s258 + $0x30] sm:$0xff] %v271
                %v273 = vld [vmem:[%s257 + $0x58] sm:$0xff]
                %274 = vst [vmem:[%s258 + $0x38] sm:$0xff] %v273
              $region53: #{transition_block.1} parent=47 // loop_footer
                %s256 = sadd.s32 1, %s252
              $region54: #{transition_block.1} parent=47 // loop_footer_branch
                %251 = sbr.rel target = $region50
              $region55: #{transition_block.1} parent=47 // loop_exit
                _
            $region48: #{transition_block.1} parent=43 // pred_fallthru
              _
            // Predicated region
            $region56: #{transition_block.1} parent=43 // pred_check
              _
            $region57: #{transition_block.1} parent=43 // pred_check_branch
              %276 = sbr.rel target = $region59
            $region58: #{transition_block.1} parent=43 // pred_region
              _
            $region59: #{transition_block.1} parent=43 // pred_fallthru
              _
          $region44: #{transition_block.1} parent=39 // pred_fallthru
            _
          %277 = vnop
        $region40: #{transition_block.1} parent=35 // pred_fallthru
          _
      $region36: #{transition_block.1} parent=5 // pred_fallthru
        _
      %p278 = scmp.le.s32.totalorder 1, %s16
      %p279 = scmp.lt.s32.totalorder %s16, 3
      %p280 = pnand %p278, %p279
      %p281 = pneg %p280
      // Predicated region
      $region60: #{transition_block.1} parent=5 // pred_check
        _
      $region61: #{transition_block.1} parent=5 // pred_check_branch
        %283 = sbr.rel (%p280) target = $region63
      $region62: #{transition_block.1} parent=5 // pred_region
        %s284 = ssub.s32 %s16, 1
        %s285 = sand.u32 %s43, 1
        %s286 = sand.u32 %s43, 1
        %s287 = smul.addr %s286, 64
        %s288 = scalar_lea.vmem [#allocation2], %s287
        // Predicated region
        $region64: #{transition_block.1} parent=62 // pred_check
          %p289 = pneg %p56
        $region65: #{transition_block.1} parent=62 // pred_check_branch
          %291 = sbr.rel (%p289) target = $region67
        $region66: #{transition_block.1} parent=62 // pred_region
          _
        $region67: #{transition_block.1} parent=62 // pred_fallthru
          _
        // Predicated region
        $region68: #{transition_block.1} parent=62 // pred_check
          %p292 = pneg %p161
        $region69: #{transition_block.1} parent=62 // pred_check_branch
          %294 = sbr.rel (%p292) target = $region71
        $region70: #{transition_block.1} parent=62 // pred_region
          %296 = dma.done [#allocation4], 4096
        $region71: #{transition_block.1} parent=62 // pred_fallthru
          _
        %s297 = sand.u32 %s43, 1
        %s298 = sand.u32 %s43, 1
        %s299 = smul.addr %s298, 64
        %s300 = scalar_lea.vmem [#allocation2], %s299
        %p301 = pneg %p56
        %p302 = pneg %p53
        %p303 = pneg %p77
        %p304 = pneg %p74
        %p305 = pneg %p98
        %p306 = pneg %p95
        %p307 = pneg %p119
        %p308 = pneg %p116
        %p309 = pneg %p140
        %p310 = pneg %p137
        %p311 = pneg %p161
        %p312 = pneg %p158
        %p313 = pneg %p189
        %p314 = pneg %p186
        %s315 = sand.u32 %s176, 1
        %s316 = scalar_lea.sflag [#allocation5], %s315
        %s317 = sand.u32 %s176, 1
        %s318 = smul.addr %s317, 64
        %s319 = scalar_lea.vmem [#allocation6], %s318
        %s320 = smul.u32 2, %s25
        %s321 = smul.u32 4, %s26
        %s322 = smul.u32 2, %s25
        %s323 = smul.u32 2, %s26
        %v324 = vld [vmem:[%s288] sm:$0xff]
        %v325 = vld [vmem:[%s288 + $0x8] sm:$0xff]
        %v326 = vld [vmem:[%s288 + $0x10] sm:$0xff]
        %v327 = vld [vmem:[%s288 + $0x18] sm:$0xff]
        %v328 = vld [vmem:[%s288 + $0x20] sm:$0xff]
        %v329 = vld [vmem:[%s288 + $0x28] sm:$0xff]
        %v330 = vld [vmem:[%s288 + $0x30] sm:$0xff]
        %v331 = vld [vmem:[%s288 + $0x38] sm:$0xff]
        %v332 = vld [vmem:[%s1] sm:$0xff]
        %334 = vset.pattern.permute.xlu0 0
        %335 = vperm.xlu0 %334, %v332
        %v336 = vpop.permute.xlu0 %335
        %v338 = vmul.f32 %v324, %v336
        %v339 = vmul.f32 %v325, %v336
        %v340 = vmul.f32 %v326, %v336
        %v341 = vmul.f32 %v327, %v336
        %v342 = vmul.f32 %v328, %v336
        %v343 = vmul.f32 %v329, %v336
        %v344 = vmul.f32 %v330, %v336
        %v345 = vmul.f32 %v331, %v336
        %v346 = vld [vmem:[%s2] sm:$0xff]
        %348 = vset.pattern.permute.xlu0 0
        %349 = vperm.xlu0 %348, %v346
        %v350 = vpop.permute.xlu0 %349
        %v352 = vadd.f32 %v338, %v350
        %v353 = vadd.f32 %v339, %v350
        %v354 = vadd.f32 %v340, %v350
        %v355 = vadd.f32 %v341, %v350
        %v356 = vadd.f32 %v342, %v350
        %v357 = vadd.f32 %v343, %v350
        %v358 = vadd.f32 %v344, %v350
        %v359 = vadd.f32 %v345, %v350
        %v360 = vmul.f32 %v352, 0.5
        %v361 = vmul.f32 %v353, 0.5
        %v362 = vmul.f32 %v354, 0.5
        %v363 = vmul.f32 %v355, 0.5
        %v364 = vmul.f32 %v356, 0.5
        %v365 = vmul.f32 %v357, 0.5
        %v366 = vmul.f32 %v358, 0.5
        %v367 = vmul.f32 %v359, 0.5
        %v368 = vmul.f32 %v352, 0.70710677
        %v369 = vmul.f32 %v353, 0.70710677
        %v370 = vmul.f32 %v354, 0.70710677
        %v371 = vmul.f32 %v355, 0.70710677
        %v372 = vmul.f32 %v356, 0.70710677
        %v373 = vmul.f32 %v357, 0.70710677
        %v374 = vmul.f32 %v358, 0.70710677
        %v375 = vmul.f32 %v359, 0.70710677
        %v376 = vmul.f32 %v368, %v368
        %v377 = vmin.f32 16.0, %v376
        %v378 = vmul.f32 %v377, 2.1237322e-06
        %v379 = vadd.f32 %v378, 0.00028619796
        %v380 = vmul.f32 %v377, %v379
        %v381 = vadd.f32 %v380, 0.0036580483
        %v382 = vmul.f32 %v377, %v381
        %v383 = vadd.f32 %v382, 0.05243302
        %v384 = vmul.f32 %v377, %v383
        %v385 = vadd.f32 %v384, 0.18741608
        %v386 = vmul.f32 %v377, %v385
        %v387 = vadd.f32 %v386, 1.1283791
        %v388 = vmul.f32 %v368, %v387
        %v389 = vmul.f32 %v377, 3.8918573e-05
        %v390 = vadd.f32 %v389, 0.001143296
        %v391 = vmul.f32 %v377, %v390
        %v392 = vadd.f32 %v391, 0.014752088
        %v393 = vmul.f32 %v377, %v392
        %v394 = vadd.f32 %v393, 0.112945676
        %v395 = vmul.f32 %v377, %v394
        %v396 = vadd.f32 %v395, 0.4994258
        %v397 = vmul.f32 %v377, %v396
        %v398 = vadd.f32 %v397, 1.0
        %v399 = vrcp.pop %v398
        %v400 = vmul.f32 %v398, %v399
        %v401 = vsub.f32 1.0, %v400
        %v402 = vmul.f32 %v399, %v401
        %v403 = vadd.f32 %v399, %v402
        %vm404 = vweird.f32 %v398
        %vm405 = vweird.f32 %v399
        %vm406 = vmor %vm404, %vm405
        %v407 = vsel %vm406, %v399, %v403
        %v408 = vand.u32 2147483647, %v398
        %vm409 = vcmp.eq.f32.partialorder %v408, 8.507059e+37
        %v410 = vand.u32 %v398, 2147483648
        %v411 = vor.u32 1.1754944e-38, %v410
        %v412 = vsel %vm409, %v411, %v407
        %v413 = vmul.f32 %v388, %v412
        %v414 = vmin.f32 %v413, 1.0
        %v415 = vmax.f32 %v414, -1.0
        %v416 = vmul.f32 %v369, %v369
        %v417 = vmin.f32 16.0, %v416
        %v418 = vmul.f32 %v417, 2.1237322e-06
        %v419 = vadd.f32 %v418, 0.00028619796
        %v420 = vmul.f32 %v417, %v419
        %v421 = vadd.f32 %v420, 0.0036580483
        %v422 = vmul.f32 %v417, %v421
        %v423 = vadd.f32 %v422, 0.05243302
        %v424 = vmul.f32 %v417, %v423
        %v425 = vadd.f32 %v424, 0.18741608
        %v426 = vmul.f32 %v417, %v425
        %v427 = vadd.f32 %v426, 1.1283791
        %v428 = vmul.f32 %v369, %v427
        %v429 = vmul.f32 %v417, 3.8918573e-05
        %v430 = vadd.f32 %v429, 0.001143296
        %v431 = vmul.f32 %v417, %v430
        %v432 = vadd.f32 %v431, 0.014752088
        %v433 = vmul.f32 %v417, %v432
        %v434 = vadd.f32 %v433, 0.112945676
        %v435 = vmul.f32 %v417, %v434
        %v436 = vadd.f32 %v435, 0.4994258
        %v437 = vmul.f32 %v417, %v436
        %v438 = vadd.f32 %v437, 1.0
        %v439 = vrcp.pop %v438
        %v440 = vmul.f32 %v438, %v439
        %v441 = vsub.f32 1.0, %v440
        %v442 = vmul.f32 %v439, %v441
        %v443 = vadd.f32 %v439, %v442
        %vm444 = vweird.f32 %v438
        %vm445 = vweird.f32 %v439
        %vm446 = vmor %vm444, %vm445
        %v447 = vsel %vm446, %v439, %v443
        %v448 = vand.u32 2147483647, %v438
        %vm449 = vcmp.eq.f32.partialorder %v448, 8.507059e+37
        %v450 = vand.u32 %v438, 2147483648
        %v451 = vor.u32 1.1754944e-38, %v450
        %v452 = vsel %vm449, %v451, %v447
        %v453 = vmul.f32 %v428, %v452
        %v454 = vmin.f32 %v453, 1.0
        %v455 = vmax.f32 %v454, -1.0
        %v456 = vmul.f32 %v370, %v370
        %v457 = vmin.f32 16.0, %v456
        %v458 = vmul.f32 %v457, 2.1237322e-06
        %v459 = vadd.f32 %v458, 0.00028619796
        %v460 = vmul.f32 %v457, %v459
        %v461 = vadd.f32 %v460, 0.0036580483
        %v462 = vmul.f32 %v457, %v461
        %v463 = vadd.f32 %v462, 0.05243302
        %v464 = vmul.f32 %v457, %v463
        %v465 = vadd.f32 %v464, 0.18741608
        %v466 = vmul.f32 %v457, %v465
        %v467 = vadd.f32 %v466, 1.1283791
        %v468 = vmul.f32 %v370, %v467
        %v469 = vmul.f32 %v457, 3.8918573e-05
        %v470 = vadd.f32 %v469, 0.001143296
        %v471 = vmul.f32 %v457, %v470
        %v472 = vadd.f32 %v471, 0.014752088
        %v473 = vmul.f32 %v457, %v472
        %v474 = vadd.f32 %v473, 0.112945676
        %v475 = vmul.f32 %v457, %v474
        %v476 = vadd.f32 %v475, 0.4994258
        %v477 = vmul.f32 %v457, %v476
        %v478 = vadd.f32 %v477, 1.0
        %v479 = vrcp.pop %v478
        %v480 = vmul.f32 %v478, %v479
        %v481 = vsub.f32 1.0, %v480
        %v482 = vmul.f32 %v479, %v481
        %v483 = vadd.f32 %v479, %v482
        %vm484 = vweird.f32 %v478
        %vm485 = vweird.f32 %v479
        %vm486 = vmor %vm484, %vm485
        %v487 = vsel %vm486, %v479, %v483
        %v488 = vand.u32 2147483647, %v478
        %vm489 = vcmp.eq.f32.partialorder %v488, 8.507059e+37
        %v490 = vand.u32 %v478, 2147483648
        %v491 = vor.u32 1.1754944e-38, %v490
        %v492 = vsel %vm489, %v491, %v487
        %v493 = vmul.f32 %v468, %v492
        %v494 = vmin.f32 %v493, 1.0
        %v495 = vmax.f32 %v494, -1.0
        %v496 = vmul.f32 %v371, %v371
        %v497 = vmin.f32 16.0, %v496
        %v498 = vmul.f32 %v497, 2.1237322e-06
        %v499 = vadd.f32 %v498, 0.00028619796
        %v500 = vmul.f32 %v497, %v499
        %v501 = vadd.f32 %v500, 0.0036580483
        %v502 = vmul.f32 %v497, %v501
        %v503 = vadd.f32 %v502, 0.05243302
        %v504 = vmul.f32 %v497, %v503
        %v505 = vadd.f32 %v504, 0.18741608
        %v506 = vmul.f32 %v497, %v505
        %v507 = vadd.f32 %v506, 1.1283791
        %v508 = vmul.f32 %v371, %v507
        %v509 = vmul.f32 %v497, 3.8918573e-05
        %v510 = vadd.f32 %v509, 0.001143296
        %v511 = vmul.f32 %v497, %v510
        %v512 = vadd.f32 %v511, 0.014752088
        %v513 = vmul.f32 %v497, %v512
        %v514 = vadd.f32 %v513, 0.112945676
        %v515 = vmul.f32 %v497, %v514
        %v516 = vadd.f32 %v515, 0.4994258
        %v517 = vmul.f32 %v497, %v516
        %v518 = vadd.f32 %v517, 1.0
        %v519 = vrcp.pop %v518
        %v520 = vmul.f32 %v518, %v519
        %v521 = vsub.f32 1.0, %v520
        %v522 = vmul.f32 %v519, %v521
        %v523 = vadd.f32 %v519, %v522
        %vm524 = vweird.f32 %v518
        %vm525 = vweird.f32 %v519
        %vm526 = vmor %vm524, %vm525
        %v527 = vsel %vm526, %v519, %v523
        %v528 = vand.u32 2147483647, %v518
        %vm529 = vcmp.eq.f32.partialorder %v528, 8.507059e+37
        %v530 = vand.u32 %v518, 2147483648
        %v531 = vor.u32 1.1754944e-38, %v530
        %v532 = vsel %vm529, %v531, %v527
        %v533 = vmul.f32 %v508, %v532
        %v534 = vmin.f32 %v533, 1.0
        %v535 = vmax.f32 %v534, -1.0
        %v536 = vmul.f32 %v372, %v372
        %v537 = vmin.f32 16.0, %v536
        %v538 = vmul.f32 %v537, 2.1237322e-06
        %v539 = vadd.f32 %v538, 0.00028619796
        %v540 = vmul.f32 %v537, %v539
        %v541 = vadd.f32 %v540, 0.0036580483
        %v542 = vmul.f32 %v537, %v541
        %v543 = vadd.f32 %v542, 0.05243302
        %v544 = vmul.f32 %v537, %v543
        %v545 = vadd.f32 %v544, 0.18741608
        %v546 = vmul.f32 %v537, %v545
        %v547 = vadd.f32 %v546, 1.1283791
        %v548 = vmul.f32 %v372, %v547
        %v549 = vmul.f32 %v537, 3.8918573e-05
        %v550 = vadd.f32 %v549, 0.001143296
        %v551 = vmul.f32 %v537, %v550
        %v552 = vadd.f32 %v551, 0.014752088
        %v553 = vmul.f32 %v537, %v552
        %v554 = vadd.f32 %v553, 0.112945676
        %v555 = vmul.f32 %v537, %v554
        %v556 = vadd.f32 %v555, 0.4994258
        %v557 = vmul.f32 %v537, %v556
        %v558 = vadd.f32 %v557, 1.0
        %v559 = vrcp.pop %v558
        %v560 = vmul.f32 %v558, %v559
        %v561 = vsub.f32 1.0, %v560
        %v562 = vmul.f32 %v559, %v561
        %v563 = vadd.f32 %v559, %v562
        %vm564 = vweird.f32 %v558
        %vm565 = vweird.f32 %v559
        %vm566 = vmor %vm564, %vm565
        %v567 = vsel %vm566, %v559, %v563
        %v568 = vand.u32 2147483647, %v558
        %vm569 = vcmp.eq.f32.partialorder %v568, 8.507059e+37
        %v570 = vand.u32 %v558, 2147483648
        %v571 = vor.u32 1.1754944e-38, %v570
        %v572 = vsel %vm569, %v571, %v567
        %v573 = vmul.f32 %v548, %v572
        %v574 = vmin.f32 %v573, 1.0
        %v575 = vmax.f32 %v574, -1.0
        %v576 = vmul.f32 %v373, %v373
        %v577 = vmin.f32 16.0, %v576
        %v578 = vmul.f32 %v577, 2.1237322e-06
        %v579 = vadd.f32 %v578, 0.00028619796
        %v580 = vmul.f32 %v577, %v579
        %v581 = vadd.f32 %v580, 0.0036580483
        %v582 = vmul.f32 %v577, %v581
        %v583 = vadd.f32 %v582, 0.05243302
        %v584 = vmul.f32 %v577, %v583
        %v585 = vadd.f32 %v584, 0.18741608
        %v586 = vmul.f32 %v577, %v585
        %v587 = vadd.f32 %v586, 1.1283791
        %v588 = vmul.f32 %v373, %v587
        %v589 = vmul.f32 %v577, 3.8918573e-05
        %v590 = vadd.f32 %v589, 0.001143296
        %v591 = vmul.f32 %v577, %v590
        %v592 = vadd.f32 %v591, 0.014752088
        %v593 = vmul.f32 %v577, %v592
        %v594 = vadd.f32 %v593, 0.112945676
        %v595 = vmul.f32 %v577, %v594
        %v596 = vadd.f32 %v595, 0.4994258
        %v597 = vmul.f32 %v577, %v596
        %v598 = vadd.f32 %v597, 1.0
        %v599 = vrcp.pop %v598
        %v600 = vmul.f32 %v598, %v599
        %v601 = vsub.f32 1.0, %v600
        %v602 = vmul.f32 %v599, %v601
        %v603 = vadd.f32 %v599, %v602
        %vm604 = vweird.f32 %v598
        %vm605 = vweird.f32 %v599
        %vm606 = vmor %vm604, %vm605
        %v607 = vsel %vm606, %v599, %v603
        %v608 = vand.u32 2147483647, %v598
        %vm609 = vcmp.eq.f32.partialorder %v608, 8.507059e+37
        %v610 = vand.u32 %v598, 2147483648
        %v611 = vor.u32 1.1754944e-38, %v610
        %v612 = vsel %vm609, %v611, %v607
        %v613 = vmul.f32 %v588, %v612
        %v614 = vmin.f32 %v613, 1.0
        %v615 = vmax.f32 %v614, -1.0
        %v616 = vmul.f32 %v374, %v374
        %v617 = vmin.f32 16.0, %v616
        %v618 = vmul.f32 %v617, 2.1237322e-06
        %v619 = vadd.f32 %v618, 0.00028619796
        %v620 = vmul.f32 %v617, %v619
        %v621 = vadd.f32 %v620, 0.0036580483
        %v622 = vmul.f32 %v617, %v621
        %v623 = vadd.f32 %v622, 0.05243302
        %v624 = vmul.f32 %v617, %v623
        %v625 = vadd.f32 %v624, 0.18741608
        %v626 = vmul.f32 %v617, %v625
        %v627 = vadd.f32 %v626, 1.1283791
        %v628 = vmul.f32 %v374, %v627
        %v629 = vmul.f32 %v617, 3.8918573e-05
        %v630 = vadd.f32 %v629, 0.001143296
        %v631 = vmul.f32 %v617, %v630
        %v632 = vadd.f32 %v631, 0.014752088
        %v633 = vmul.f32 %v617, %v632
        %v634 = vadd.f32 %v633, 0.112945676
        %v635 = vmul.f32 %v617, %v634
        %v636 = vadd.f32 %v635, 0.4994258
        %v637 = vmul.f32 %v617, %v636
        %v638 = vadd.f32 %v637, 1.0
        %v639 = vrcp.pop %v638
        %v640 = vmul.f32 %v638, %v639
        %v641 = vsub.f32 1.0, %v640
        %v642 = vmul.f32 %v639, %v641
        %v643 = vadd.f32 %v639, %v642
        %vm644 = vweird.f32 %v638
        %vm645 = vweird.f32 %v639
        %vm646 = vmor %vm644, %vm645
        %v647 = vsel %vm646, %v639, %v643
        %v648 = vand.u32 2147483647, %v638
        %vm649 = vcmp.eq.f32.partialorder %v648, 8.507059e+37
        %v650 = vand.u32 %v638, 2147483648
        %v651 = vor.u32 1.1754944e-38, %v650
        %v652 = vsel %vm649, %v651, %v647
        %v653 = vmul.f32 %v628, %v652
        %v654 = vmin.f32 %v653, 1.0
        %v655 = vmax.f32 %v654, -1.0
        %v656 = vmul.f32 %v375, %v375
        %v657 = vmin.f32 16.0, %v656
        %v658 = vmul.f32 %v657, 2.1237322e-06
        %v659 = vadd.f32 %v658, 0.00028619796
        %v660 = vmul.f32 %v657, %v659
        %v661 = vadd.f32 %v660, 0.0036580483
        %v662 = vmul.f32 %v657, %v661
        %v663 = vadd.f32 %v662, 0.05243302
        %v664 = vmul.f32 %v657, %v663
        %v665 = vadd.f32 %v664, 0.18741608
        %v666 = vmul.f32 %v657, %v665
        %v667 = vadd.f32 %v666, 1.1283791
        %v668 = vmul.f32 %v375, %v667
        %v669 = vmul.f32 %v657, 3.8918573e-05
        %v670 = vadd.f32 %v669, 0.001143296
        %v671 = vmul.f32 %v657, %v670
        %v672 = vadd.f32 %v671, 0.014752088
        %v673 = vmul.f32 %v657, %v672
        %v674 = vadd.f32 %v673, 0.112945676
        %v675 = vmul.f32 %v657, %v674
        %v676 = vadd.f32 %v675, 0.4994258
        %v677 = vmul.f32 %v657, %v676
        %v678 = vadd.f32 %v677, 1.0
        %v679 = vrcp.pop %v678
        %v680 = vmul.f32 %v678, %v679
        %v681 = vsub.f32 1.0, %v680
        %v682 = vmul.f32 %v679, %v681
        %v683 = vadd.f32 %v679, %v682
        %vm684 = vweird.f32 %v678
        %vm685 = vweird.f32 %v679
        %vm686 = vmor %vm684, %vm685
        %v687 = vsel %vm686, %v679, %v683
        %v688 = vand.u32 2147483647, %v678
        %vm689 = vcmp.eq.f32.partialorder %v688, 8.507059e+37
        %v690 = vand.u32 %v678, 2147483648
        %v691 = vor.u32 1.1754944e-38, %v690
        %v692 = vsel %vm689, %v691, %v687
        %v693 = vmul.f32 %v668, %v692
        %v694 = vmin.f32 %v693, 1.0
        %v695 = vmax.f32 %v694, -1.0
        %v696 = vadd.f32 %v415, 1.0
        %v697 = vadd.f32 %v455, 1.0
        %v698 = vadd.f32 %v495, 1.0
        %v699 = vadd.f32 %v535, 1.0
        %v700 = vadd.f32 %v575, 1.0
        %v701 = vadd.f32 %v615, 1.0
        %v702 = vadd.f32 %v655, 1.0
        %v703 = vadd.f32 %v695, 1.0
        %v704 = vmul.f32 %v360, %v696
        %v705 = vmul.f32 %v361, %v697
        %v706 = vmul.f32 %v362, %v698
        %v707 = vmul.f32 %v363, %v699
        %v708 = vmul.f32 %v364, %v700
        %v709 = vmul.f32 %v365, %v701
        %v710 = vmul.f32 %v366, %v702
        %v711 = vmul.f32 %v367, %v703
        %v712 = vld [vmem:[#allocation3] sm:$0xff]
        %v713 = vld [vmem:[#allocation3 + $0x8] sm:$0xff]
        %v714 = vld [vmem:[#allocation3 + $0x10] sm:$0xff]
        %v715 = vld [vmem:[#allocation3 + $0x18] sm:$0xff]
        %v716 = vld [vmem:[#allocation3 + $0x20] sm:$0xff]
        %v717 = vld [vmem:[#allocation3 + $0x28] sm:$0xff]
        %v718 = vld [vmem:[#allocation3 + $0x30] sm:$0xff]
        %v719 = vld [vmem:[#allocation3 + $0x38] sm:$0xff]
        %v720 = vld [vmem:[#allocation3 + $0x40] sm:$0xff]
        %v721 = vld [vmem:[#allocation3 + $0x48] sm:$0xff]
        %v722 = vld [vmem:[#allocation3 + $0x50] sm:$0xff]
        %v723 = vld [vmem:[#allocation3 + $0x58] sm:$0xff]
        %v724 = vld [vmem:[#allocation3 + $0x60] sm:$0xff]
        %v725 = vld [vmem:[#allocation3 + $0x68] sm:$0xff]
        %v726 = vld [vmem:[#allocation3 + $0x70] sm:$0xff]
        %v727 = vld [vmem:[#allocation3 + $0x78] sm:$0xff]
        %v728 = vld [vmem:[#allocation3 + $0x80] sm:$0xff]
        %v729 = vld [vmem:[#allocation3 + $0x88] sm:$0xff]
        %v730 = vld [vmem:[#allocation3 + $0x90] sm:$0xff]
        %v731 = vld [vmem:[#allocation3 + $0x98] sm:$0xff]
        %v732 = vld [vmem:[#allocation3 + $0xa0] sm:$0xff]
        %v733 = vld [vmem:[#allocation3 + $0xa8] sm:$0xff]
        %v734 = vld [vmem:[#allocation3 + $0xb0] sm:$0xff]
        %v735 = vld [vmem:[#allocation3 + $0xb8] sm:$0xff]
        %v736 = vld [vmem:[#allocation3 + $0xc0] sm:$0xff]
        %v737 = vld [vmem:[#allocation3 + $0xc8] sm:$0xff]
        %v738 = vld [vmem:[#allocation3 + $0xd0] sm:$0xff]
        %v739 = vld [vmem:[#allocation3 + $0xd8] sm:$0xff]
        %v740 = vld [vmem:[#allocation3 + $0xe0] sm:$0xff]
        %v741 = vld [vmem:[#allocation3 + $0xe8] sm:$0xff]
        %v742 = vld [vmem:[#allocation3 + $0xf0] sm:$0xff]
        %v743 = vld [vmem:[#allocation3 + $0xf8] sm:$0xff]
        %744 = vmatpush.msra.mxu0 %v727
        %745 = vmatpush.msra.mxu0 %v726
        %746 = vmatpush.msra.mxu0 %v725
        %747 = vmatpush.msra.mxu0 %v724
        %748 = vmatpush.msra.mxu0 %v723
        %749 = vmatpush.msra.mxu0 %v722
        %750 = vmatpush.msra.mxu0 %v721
        %751 = vmatpush.msra.mxu0 %v720
        %752 = vmatpush.msra.mxu0 %v719
        %753 = vmatpush.msra.mxu0 %v718
        %754 = vmatpush.msra.mxu0 %v717
        %755 = vmatpush.msra.mxu0 %v716
        %756 = vmatpush.msra.mxu0 %v715
        %757 = vmatpush.msra.mxu0 %v714
        %758 = vmatpush.msra.mxu0 %v713
        %759 = vmatpush.msra.mxu0 %v712
        %760 = vmatmul.f32.gmra.mxu0 %v704
        %v761 = vpop.f32.mrf.mxu0
        %v762 = vadd.f32 0.0, %v761
        %763 = vmatmul.f32.gmra.mxu0 %v708
        %v764 = vpop.f32.mrf.mxu0
        %v765 = vadd.f32 0.0, %v764
        %766 = vdwg.mxu0
        %767 = vmatpush.msra.mxu0 %v743
        %768 = vmatpush.msra.mxu0 %v742
        %769 = vmatpush.msra.mxu0 %v741
        %770 = vmatpush.msra.mxu0 %v740
        %771 = vmatpush.msra.mxu0 %v739
        %772 = vmatpush.msra.mxu0 %v738
        %773 = vmatpush.msra.mxu0 %v737
        %774 = vmatpush.msra.mxu0 %v736
        %775 = vmatpush.msra.mxu0 %v735
        %776 = vmatpush.msra.mxu0 %v734
        %777 = vmatpush.msra.mxu0 %v733
        %778 = vmatpush.msra.mxu0 %v732
        %779 = vmatpush.msra.mxu0 %v731
        %780 = vmatpush.msra.mxu0 %v730
        %781 = vmatpush.msra.mxu0 %v729
        %782 = vmatpush.msra.mxu0 %v728
        %783 = vmatmul.f32.gmra.mxu0 %v705
        %v784 = vpop.f32.mrf.mxu0
        %v785 = vadd.f32 %v762, %v784
        %786 = vmatmul.f32.gmra.mxu0 %v709
        %v787 = vpop.f32.mrf.mxu0
        %v788 = vadd.f32 %v765, %v787
        %789 = vdwg.mxu0
        %790 = vmatpush.msra.mxu0 %v727
        %791 = vmatpush.msra.mxu0 %v726
        %792 = vmatpush.msra.mxu0 %v725
        %793 = vmatpush.msra.mxu0 %v724
        %794 = vmatpush.msra.mxu0 %v723
        %795 = vmatpush.msra.mxu0 %v722
        %796 = vmatpush.msra.mxu0 %v721
        %797 = vmatpush.msra.mxu0 %v720
        %798 = vmatpush.msra.mxu0 %v719
        %799 = vmatpush.msra.mxu0 %v718
        %800 = vmatpush.msra.mxu0 %v717
        %801 = vmatpush.msra.mxu0 %v716
        %802 = vmatpush.msra.mxu0 %v715
        %803 = vmatpush.msra.mxu0 %v714
        %804 = vmatpush.msra.mxu0 %v713
        %805 = vmatpush.msra.mxu0 %v712
        %806 = vmatmul.f32.gmra.mxu0 %v706
        %v807 = vpop.f32.mrf.mxu0
        %v808 = vadd.f32 0.0, %v807
        %809 = vmatmul.f32.gmra.mxu0 %v710
        %v810 = vpop.f32.mrf.mxu0
        %v811 = vadd.f32 0.0, %v810
        %812 = vdwg.mxu0
        %813 = vmatpush.msra.mxu0 %v743
        %814 = vmatpush.msra.mxu0 %v742
        %815 = vmatpush.msra.mxu0 %v741
        %816 = vmatpush.msra.mxu0 %v740
        %817 = vmatpush.msra.mxu0 %v739
        %818 = vmatpush.msra.mxu0 %v738
        %819 = vmatpush.msra.mxu0 %v737
        %820 = vmatpush.msra.mxu0 %v736
        %821 = vmatpush.msra.mxu0 %v735
        %822 = vmatpush.msra.mxu0 %v734
        %823 = vmatpush.msra.mxu0 %v733
        %824 = vmatpush.msra.mxu0 %v732
        %825 = vmatpush.msra.mxu0 %v731
        %826 = vmatpush.msra.mxu0 %v730
        %827 = vmatpush.msra.mxu0 %v729
        %828 = vmatpush.msra.mxu0 %v728
        %829 = vmatmul.f32.gmra.mxu0 %v707
        %v830 = vpop.f32.mrf.mxu0
        %v831 = vadd.f32 %v808, %v830
        %832 = vmatmul.f32.gmra.mxu0 %v711
        %v833 = vpop.f32.mrf.mxu0
        %v834 = vadd.f32 %v811, %v833
        %835 = vdwg.mxu0
        %v836 = vld [vmem:[%s3] sm:$0xff]
        %v837 = vld [vmem:[%s3 + $0x8] sm:$0xff]
        %v838 = vld [vmem:[%s3 + $0x10] sm:$0xff]
        %v839 = vld [vmem:[%s3 + $0x18] sm:$0xff]
        %v840 = vld [vmem:[%s4] sm:$0xff]
        %v841 = vld [vmem:[%s4 + $0x8] sm:$0xff]
        %v842 = vld [vmem:[%s4 + $0x10] sm:$0xff]
        %v843 = vld [vmem:[%s4 + $0x18] sm:$0xff]
        %845 = vset.pattern.permute.xlu0 0
        %846 = vperm.xlu0 %845, %v840
        %v847 = vpop.permute.xlu0 %846
        %850 = vset.pattern.permute.xlu0 0
        %851 = vperm.xlu0 %850, %v841
        %v852 = vpop.permute.xlu0 %851
        %855 = vset.pattern.permute.xlu0 0
        %856 = vperm.xlu0 %855, %v842
        %v857 = vpop.permute.xlu0 %856
        %860 = vset.pattern.permute.xlu0 0
        %861 = vperm.xlu0 %860, %v843
        %v862 = vpop.permute.xlu0 %861
        %vm864 = vcmask 130048
        %v866 = vsel %vm864, %v836, 0
        %v869 = vsel %vm864, %v837, 0
        %v872 = vsel %vm864, %v838, 0
        %v875 = vsel %vm864, %v839, 0
        %877 = vmatpush.msra.mxu0 0.0
        %878 = vmatpush.msra.mxu0 0.0
        %879 = vmatpush.msra.mxu0 0.0
        %880 = vmatpush.msra.mxu0 0.0
        %881 = vmatpush.msra.mxu0 0.0
        %882 = vmatpush.msra.mxu0 0.0
        %883 = vmatpush.msra.mxu0 0.0
        %884 = vmatpush.msra.mxu0 0.0
        %885 = vmatpush.msra.mxu0 0.0
        %886 = vmatpush.msra.mxu0 0.0
        %887 = vmatpush.msra.mxu0 0.0
        %888 = vmatpush.msra.mxu0 0.0
        %889 = vmatpush.msra.mxu0 0.0
        %890 = vmatpush.msra.mxu0 0.0
        %891 = vmatpush.msra.mxu0 %v788
        %892 = vmatpush.msra.mxu0 %v785
        %893 = vmatmul.f32.gmra.mxu0 %v866
        %v894 = vpop.f32.mrf.mxu0
        %v895 = vadd.f32 %v847, %v894
        %896 = vmatmul.f32.gmra.mxu0 %v869
        %v897 = vpop.f32.mrf.mxu0
        %v898 = vadd.f32 %v852, %v897
        %899 = vmatmul.f32.gmra.mxu0 %v872
        %v900 = vpop.f32.mrf.mxu0
        %v901 = vadd.f32 %v857, %v900
        %902 = vmatmul.f32.gmra.mxu0 %v875
        %v903 = vpop.f32.mrf.mxu0
        %v904 = vadd.f32 %v862, %v903
        %905 = vdwg.mxu0
        %906 = vmatpush.msra.mxu0 0.0
        %907 = vmatpush.msra.mxu0 0.0
        %908 = vmatpush.msra.mxu0 0.0
        %909 = vmatpush.msra.mxu0 0.0
        %910 = vmatpush.msra.mxu0 0.0
        %911 = vmatpush.msra.mxu0 0.0
        %912 = vmatpush.msra.mxu0 0.0
        %913 = vmatpush.msra.mxu0 0.0
        %914 = vmatpush.msra.mxu0 0.0
        %915 = vmatpush.msra.mxu0 0.0
        %916 = vmatpush.msra.mxu0 0.0
        %917 = vmatpush.msra.mxu0 0.0
        %918 = vmatpush.msra.mxu0 0.0
        %919 = vmatpush.msra.mxu0 0.0
        %920 = vmatpush.msra.mxu0 %v834
        %921 = vmatpush.msra.mxu0 %v831
        %922 = vmatmul.f32.gmra.mxu0 %v866
        %v923 = vpop.f32.mrf.mxu0
        %v924 = vadd.f32 %v847, %v923
        %925 = vmatmul.f32.gmra.mxu0 %v869
        %v926 = vpop.f32.mrf.mxu0
        %v927 = vadd.f32 %v852, %v926
        %928 = vmatmul.f32.gmra.mxu0 %v872
        %v929 = vpop.f32.mrf.mxu0
        %v930 = vadd.f32 %v857, %v929
        %931 = vmatmul.f32.gmra.mxu0 %v875
        %v932 = vpop.f32.mrf.mxu0
        %v933 = vadd.f32 %v862, %v932
        %934 = vdwg.mxu0
        %935 = vst [vmem:[%s319] sm:$0xff] %v895
        %936 = vst [vmem:[%s319 + $0x8] sm:$0xff] %v924
        %937 = vst [vmem:[%s319 + $0x10] sm:$0xff] %v898
        %938 = vst [vmem:[%s319 + $0x18] sm:$0xff] %v927
        %939 = vst [vmem:[%s319 + $0x20] sm:$0xff] %v901
        %940 = vst [vmem:[%s319 + $0x28] sm:$0xff] %v930
        %941 = vst [vmem:[%s319 + $0x30] sm:$0xff] %v904
        %942 = vst [vmem:[%s319 + $0x38] sm:$0xff] %v933
        %s943 = sand.u32 %s176, 1
        %s944 = scalar_lea.sflag [#allocation5], %s943
        %s945 = sand.u32 %s176, 1
        %s946 = smul.addr %s945, 64
        %s947 = scalar_lea.vmem [#allocation6], %s946
        // Predicated region
        $region72: #{transition_block.1} parent=62 // pred_check
          %p948 = pneg %p186
        $region73: #{transition_block.1} parent=62 // pred_check_branch
          %950 = sbr.rel (%p948) target = $region75
        $region74: #{transition_block.1} parent=62 // pred_region
          %s951 = smul.u32 2, %s25
          %s952 = smul.u32 2, %s26
          %954 = vsyncadd %s944, 0
          %s955 = smul.addr %s951, 8
          %s956 = sadd.s32 %s952, %s955
          %s957 = smul.addr %s956, 8
          %s958 = scalar_lea.hbm %s6, %s957
          %s959 = sshll.u32 %s947, 4
          %s960 = int_to_ptr.vmem [resolvable:$true] %s959
          %s961 = sshll.u32 %s958, 4
          %s962 = int_to_ptr.hbm [resolvable:$true] %s961
          %967 = dma.vmem_to_hbm [thread:$0]  %s960, 1024, %s962, %s944, 256, 512, 16
        $region75: #{transition_block.1} parent=62 // pred_fallthru
          _
      $region63: #{transition_block.1} parent=5 // pred_fallthru
        _
      %p968 = scmp.le.s32.totalorder 2, %s16
      // Predicated region
      $region76: #{transition_block.1} parent=5 // pred_check
        %p969 = pneg %p968
      $region77: #{transition_block.1} parent=5 // pred_check_branch
        %971 = sbr.rel (%p969) target = $region79
      $region78: #{transition_block.1} parent=5 // pred_region
        %s972 = ssub.s32 %s16, 2
        // Predicated region
        $region80: #{transition_block.1} parent=78 // pred_check
          %p973 = pneg %p192
        $region81: #{transition_block.1} parent=78 // pred_check_branch
          %975 = sbr.rel (%p973) target = $region83
        $region82: #{transition_block.1} parent=78 // pred_region
          %s976 = sand.u32 %s177, 1
          %s977 = scalar_lea.sflag [#allocation5], %s976
          %s978 = sand.u32 %s177, 1
          %s979 = smul.addr %s978, 64
          %s980 = scalar_lea.vmem [#allocation6], %s979
          %982 = dma.done %s977, 1024
        $region83: #{transition_block.1} parent=78 // pred_fallthru
          _
      $region79: #{transition_block.1} parent=5 // pred_fallthru
        _
    $region6: #{transition_block.1} parent=1 // loop_footer
      %s20 = sadd.s32 1, %s16
    $region7: #{transition_block.1} parent=1 // loop_footer_branch
      %15 = sbr.rel target = $region3
    $region8: #{transition_block.1} parent=1 // loop_exit
      _
    %983 = vsyncpa [#allocation4], 1
    %s984 = scalar_lea.sflag [#allocation4], 1
    %985 = vsyncpa %s984, 1
    %986 = vsyncpa [#allocation5], 1
    %s987 = scalar_lea.sflag [#allocation5], 1
    %988 = vsyncpa %s987, 1

</llo_original>
